<compile_context>
chip_gen: v5e
topology: v5e:2x2
jax: 0.10.0
libtpu: 0.0.40
codegen_flags: <defaults>
</compile_context>

<pallas_src>
import functools
import math

import jax
import jax.numpy as jnp
from jax import lax
from jax.experimental import pallas as pl
from jax.experimental.pallas import tpu as pltpu


# ---------------------------------------------------------------------------
# Positional encoding (host-side constant, folded at trace time)
# ---------------------------------------------------------------------------
def positional_encoding(length, d_model):
    pos = jnp.arange(length, dtype=jnp.float32)[:, None]
    div = jnp.exp(jnp.arange(0, d_model, 2, dtype=jnp.float32)
                  * (-math.log(10000.0) / d_model))
    pe = jnp.zeros((length, d_model), jnp.float32)
    pe = pe.at[:, 0::2].set(jnp.sin(pos * div))
    pe = pe.at[:, 1::2].set(jnp.cos(pos * div)[:, : d_model // 2])
    return pe


# ---------------------------------------------------------------------------
# Fused forward kernel: embedding + time-axis MLP + projection, TB batch elems
# ---------------------------------------------------------------------------
def make_fused_mlp_kernel(n_mlp):
    def kernel(xin_ref, wemb_ref, bemb_ref, *rest):
        # rest = [w_mlp0, b_mlp0, ..., w_mlp_{n-1}, b_mlp_{n-1},
        #         w_proj, b_proj, out_ref]
        out_ref = rest[-1]
        wproj_ref = rest[-3]
        bproj_ref = rest[-2]
        mlp_refs = rest[:2 * n_mlp]
        f32 = jnp.float32

        tb, seq_len, d_cat = xin_ref.shape
        d_model = wemb_ref.shape[-1]

        # --- fused DataEmbedding: ONE (TB*L, d_cat) x (d_cat, d_model) matmul
        #     (conv taps on x[t-1], x[t], x[t+1] + time features, weights stacked
        #      along K at trace time), then bias = pos-encoding + b_time.
        xin = xin_ref[...].reshape(tb * seq_len, d_cat)
        emb = jnp.dot(xin, wemb_ref[...], preferred_element_type=f32)
        h = emb.reshape(tb, seq_len, d_model) + bemb_ref[...][None]   # (TB,L,D)

        # --- time-axis MLP as batched matmuls over the time axis:
        #     (TB, out_i, in_i) @ (TB, in_i, D) -> (TB, out_i, D).
        #     Torch (out,in) weights are used as-is, so no transposes appear.
        for i in range(n_mlp):
            w = mlp_refs[2 * i][...]                 # (out_i, in_i)
            b = mlp_refs[2 * i + 1][...]             # (out_i, 1)
            wb = jnp.broadcast_to(w[None], (tb,) + w.shape)
            h = lax.dot_general(wb, h,
                                dimension_numbers=(((2,), (1,)), ((0,), (0,))),
                                preferred_element_type=f32)
            h = h + b[None]                          # bias along the out axis
            if i < n_mlp - 1:                        # ReLU on hidden layers only
                h = jnp.maximum(h, 0.0)
        pred_len = h.shape[1]

        # --- final projection over d_model (lane axis), flattened to 2-D
        h2 = h.reshape(tb * pred_len, d_model)
        out = (jnp.dot(h2, wproj_ref[...], preferred_element_type=f32)
               + bproj_ref[...])
        out_ref[...] = out.reshape(tb, pred_len, -1).astype(out_ref.dtype)

    return kernel


def mlp_forward(x, x_mark, y_mark, params, *, d_model, pred_len, c_out,
                block_b=None):
    # y_mark accepted for API parity but unused (as in the PyTorch forward).
    del y_mark
    B, L, c_in = x.shape
    d_mark = x_mark.shape[-1]
    mlp_w, mlp_b = params["mlp_w"], params["mlp_b"]
    n_mlp = len(mlp_w)

    # ---- trace-time constant folding -------------------------------------
    pe = positional_encoding(L, d_model)
    bias_emb = pe + params["b_time"][None, :]                       # (L, D)
    w_emb = jnp.concatenate(                                        # (3*c_in+d_mark, D)
        [params["w_tok"][0], params["w_tok"][1], params["w_tok"][2],
         params["w_time"]], axis=0)

    # ---- wrapper-side input prep: circular shifts + lane-concat ----------
    # x[t-1] pairs with conv tap 0, x[t] with tap 1, x[t+1] with tap 2
    # (circular padding, padding=1).
    x_prev = jnp.roll(x, 1, axis=1)
    x_next = jnp.roll(x, -1, axis=1)
    xin = jnp.concatenate([x_prev, x, x_next, x_mark], axis=-1)     # (B, L, Dcat)
    d_cat = xin.shape[-1]

    # ---- batch tiling: >=2 grid steps (even) so both v7x TCs are used;
    #      MAX_TB keeps double-buffered blocks tiny vs. any VMEM budget.
    MAX_TB = 128
    if block_b is not None:
        tb = int(block_b)
        steps = pl.cdiv(B, tb)
    elif B <= 1:
        tb, steps = 1, 1
    else:
        steps = max(2, pl.cdiv(B, MAX_TB))
        steps += steps % 2
        tb = pl.cdiv(B, steps)
    b_pad = steps * tb
    if b_pad != B:
        xin = jnp.pad(xin, ((0, b_pad - B), (0, 0), (0, 0)))

    args = [xin, w_emb, bias_emb]
    for w, b in zip(mlp_w, mlp_b):
        args += [w, b.reshape(-1, 1)]
    args += [params["w_proj"], params["b_proj"].reshape(1, -1)]

    def full_spec(a):
        nd = a.ndim
        return pl.BlockSpec(a.shape, lambda i, _nd=nd: (0,) * _nd)

    in_specs = ([pl.BlockSpec((tb, L, d_cat), lambda i: (i, 0, 0))]
                + [full_spec(a) for a in args[1:]])

    out = pl.pallas_call(
        make_fused_mlp_kernel(n_mlp),
        out_shape=jax.ShapeDtypeStruct((b_pad, pred_len, c_out), jnp.float32),
        grid=(steps,),
        in_specs=in_specs,
        out_specs=pl.BlockSpec((tb, pred_len, c_out), lambda i: (i, 0, 0)),
        compiler_params=pltpu.CompilerParams(dimension_semantics=("parallel",)),
    )(*args)
    return out[:B] if b_pad != B else out


# ---------------------------------------------------------------------------
# Pure-JAX reference (same math, separate conv taps, HIGHEST precision)
# ---------------------------------------------------------------------------
def mlp_forward_reference(x, x_mark, params, *, d_model, pred_len, c_out):
    hp = lax.Precision.HIGHEST
    B, L, c_in = x.shape
    pe = positional_encoding(L, d_model)
    x_prev = jnp.roll(x, 1, axis=1)
    x_next = jnp.roll(x, -1, axis=1)
    emb = (jnp.einsum("blc,cd->bld", x_prev, params["w_tok"][0], precision=hp)
           + jnp.einsum("blc,cd->bld", x, params["w_tok"][1], precision=hp)
           + jnp.einsum("blc,cd->bld", x_next, params["w_tok"][2], precision=hp)
           + jnp.einsum("blm,md->bld", x_mark, params["w_time"], precision=hp)
           + params["b_time"][None, None, :] + pe[None])
    h = jnp.transpose(emb, (0, 2, 1))                 # (B, d_model, L)
    n = len(params["mlp_w"])
    for i, (w, b) in enumerate(zip(params["mlp_w"], params["mlp_b"])):
        h = jnp.einsum("bdk,ok->bdo", h, w, precision=hp) + b[None, None, :]
        if i < n - 1:
            h = jnp.maximum(h, 0.0)
    h = jnp.transpose(h, (0, 2, 1))                   # (B, pred_len, d_model)
    return (jnp.einsum("bpd,dc->bpc", h, params["w_proj"], precision=hp)
            + params["b_proj"][None, None, :])


# ---------------------------------------------------------------------------
# Deterministic parameter construction (synthetic init, no checkpoint)
# ---------------------------------------------------------------------------
def init_params(key, *, c_in, c_out, d_model, dims, hist_len, pred_len, d_mark):
    n_layers = len(dims) + 1
    keys = jax.random.split(key, 5 + 2 * n_layers)
    it = iter(keys)

    def dense(k_in, k_out, kw, kb):      # torch nn.Linear default init, (out,in)
        s = 1.0 / math.sqrt(k_in)
        w = jax.random.uniform(kw, (k_out, k_in), jnp.float32, -s, s)
        b = jax.random.uniform(kb, (k_out,), jnp.float32, -s, s)
        return w, b

    p = {}
    # TokenEmbedding Conv1d weight: torch shape (d_model, c_in, 3), kaiming.
    # Stored as (3, c_in, d_model) with w_tok[k, ci, o] == torch_w[o, ci, k];
    # tap k pairs with x[t + k - 1] (circular padding).
    fan_in = 3 * c_in
    std = math.sqrt(2.0 / (1.0 + 0.01 ** 2)) / math.sqrt(fan_in)
    p["w_tok"] = std * jax.random.normal(next(it), (3, c_in, d_model), jnp.float32)

    wt, bt = dense(d_mark, d_model, next(it), next(it))
    p["w_time"], p["b_time"] = wt.T, bt               # (d_mark, d_model), (d_model,)

    mlp_w, mlp_b = [], []
    layer_dims = [hist_len] + list(dims) + [pred_len]
    for i in range(n_layers):
        w, b = dense(layer_dims[i], layer_dims[i + 1], next(it), next(it))
        mlp_w.append(w)                               # (out, in) torch layout
        mlp_b.append(b)
    p["mlp_w"], p["mlp_b"] = mlp_w, mlp_b

    wp, bp = dense(d_model, c_out, next(it), next(it))
    p["w_proj"], p["b_proj"] = wp.T, bp               # (d_model, c_out), (c_out,)
    return p


if __name__ == "__main__":
    # Small config consistent with the module's __init__
    c_in, c_out = 4, 4
    d_model = 32
    dims = [32, 32]              # num_hidden_dimensions
    hist_len, pred_len = 16, 8
    d_mark = 4                   # time-feature dim (freq='h')
    B = 2

    key = jax.random.PRNGKey(0)
    k_x, k_xm, k_ym, k_p = jax.random.split(key, 4)

    x = jax.random.normal(k_x, (B, hist_len, c_in), jnp.float32)
    x_mark = jax.random.normal(k_xm, (B, hist_len, d_mark), jnp.float32)
    y_mark = jax.random.normal(k_ym, (B, pred_len, d_mark), jnp.float32)

    params = init_params(k_p, c_in=c_in, c_out=c_out, d_model=d_model,
                         dims=dims, hist_len=hist_len, pred_len=pred_len,
                         d_mark=d_mark)

    fwd = jax.jit(functools.partial(mlp_forward, d_model=d_model,
                                    pred_len=pred_len, c_out=c_out))
    out = fwd(x, x_mark, y_mark, params)
    jax.block_until_ready(out)
    assert out.shape == (B, pred_len, c_out), out.shape

    # TODO(synk): conv-tap <-> time-shift pairing validated only against this
    # JAX reference (circular pad semantics), not a live torch Conv1d forward.
    ref = mlp_forward_reference(x, x_mark, params, d_model=d_model,
                                pred_len=pred_len, c_out=c_out)
    err = float(jnp.max(jnp.abs(out - ref)))
    assert jnp.allclose(out, ref, rtol=1e-4, atol=1e-4), f"max abs err {err}"

    print("KERNEL_OK")
</pallas_src>

<mosaic_0001>
module attributes {stable_mosaic.version = 11 : i64} {
  func.func @kernel(%arg0: i32, %arg1: memref<1x16x16xf32, #tpu.memory_space<vmem>>, %arg2: memref<16x32xf32, #tpu.memory_space<vmem>>, %arg3: memref<16x32xf32, #tpu.memory_space<vmem>>, %arg4: memref<32x16xf32, #tpu.memory_space<vmem>>, %arg5: memref<32x1xf32, #tpu.memory_space<vmem>>, %arg6: memref<32x32xf32, #tpu.memory_space<vmem>>, %arg7: memref<32x1xf32, #tpu.memory_space<vmem>>, %arg8: memref<8x32xf32, #tpu.memory_space<vmem>>, %arg9: memref<8x1xf32, #tpu.memory_space<vmem>>, %arg10: memref<32x4xf32, #tpu.memory_space<vmem>>, %arg11: memref<1x4xf32, #tpu.memory_space<vmem>>, %arg12: memref<1x8x4xf32, #tpu.memory_space<vmem>>) attributes {dimension_semantics = [#tpu.dimension_semantics<parallel>], iteration_bounds = array<i64: 2>, scalar_prefetch = 0 : i64, scratch_operands = 0 : i64, tpu.core_type = #tpu.core_type<tc>, window_params = [{transform_indices = @transform_0, window_bounds = array<i64: 1, 16, 16>}, {pipeline_mode = #tpu.pipeline_mode<synchronous>, transform_indices = @transform_1, window_bounds = array<i64: 16, 32>}, {pipeline_mode = #tpu.pipeline_mode<synchronous>, transform_indices = @transform_2, window_bounds = array<i64: 16, 32>}, {pipeline_mode = #tpu.pipeline_mode<synchronous>, transform_indices = @transform_3, window_bounds = array<i64: 32, 16>}, {pipeline_mode = #tpu.pipeline_mode<synchronous>, transform_indices = @transform_4, window_bounds = array<i64: 32, 1>}, {pipeline_mode = #tpu.pipeline_mode<synchronous>, transform_indices = @transform_5, window_bounds = array<i64: 32, 32>}, {pipeline_mode = #tpu.pipeline_mode<synchronous>, transform_indices = @transform_6, window_bounds = array<i64: 32, 1>}, {pipeline_mode = #tpu.pipeline_mode<synchronous>, transform_indices = @transform_7, window_bounds = array<i64: 8, 32>}, {pipeline_mode = #tpu.pipeline_mode<synchronous>, transform_indices = @transform_8, window_bounds = array<i64: 8, 1>}, {pipeline_mode = #tpu.pipeline_mode<synchronous>, transform_indices = @transform_9, window_bounds = array<i64: 32, 4>}, {pipeline_mode = #tpu.pipeline_mode<synchronous>, transform_indices = @transform_10, window_bounds = array<i64: 1, 4>}, {transform_indices = @transform_11, window_bounds = array<i64: 1, 8, 4>}]} {
    %c0 = arith.constant 0 : index
    %c0_0 = arith.constant 0 : index
    %c0_1 = arith.constant 0 : index
    %0 = vector.load %arg1[%c0, %c0_0, %c0_1] : memref<1x16x16xf32, #tpu.memory_space<vmem>>, vector<1x16x16xf32>
    %1 = vector.shape_cast %0 : vector<1x16x16xf32> to vector<16x16xf32>
    %c0_2 = arith.constant 0 : index
    %c0_3 = arith.constant 0 : index
    %2 = vector.load %arg2[%c0_2, %c0_3] : memref<16x32xf32, #tpu.memory_space<vmem>>, vector<16x32xf32>
    %cst = arith.constant dense<0.000000e+00> : vector<16x32xf32>
    %3 = tpu.matmul %1, %2, %cst {dimension_numbers = #tpu.dot_dimension_numbers<[1], [0], [0], [1], [0, 0, 1, 1], [], []>} : vector<16x16xf32>, vector<16x32xf32>, vector<16x32xf32> -> vector<16x32xf32>
    %4 = vector.shape_cast %3 : vector<16x32xf32> to vector<1x16x32xf32>
    %c0_4 = arith.constant 0 : index
    %c0_5 = arith.constant 0 : index
    %5 = vector.load %arg3[%c0_4, %c0_5] : memref<16x32xf32, #tpu.memory_space<vmem>>, vector<16x32xf32>
    %6 = vector.shape_cast %5 : vector<16x32xf32> to vector<1x16x32xf32>
    %7 = arith.addf %4, %6 : vector<1x16x32xf32>
    %c0_6 = arith.constant 0 : index
    %c0_7 = arith.constant 0 : index
    %8 = vector.load %arg4[%c0_6, %c0_7] : memref<32x16xf32, #tpu.memory_space<vmem>>, vector<32x16xf32>
    %c0_8 = arith.constant 0 : index
    %c0_9 = arith.constant 0 : index
    %9 = vector.load %arg5[%c0_8, %c0_9] : memref<32x1xf32, #tpu.memory_space<vmem>>, vector<32x1xf32>
    %10 = vector.shape_cast %8 : vector<32x16xf32> to vector<1x32x16xf32>
    %cst_10 = arith.constant dense<0.000000e+00> : vector<1x32x32xf32>
    %11 = tpu.matmul %10, %7, %cst_10 {dimension_numbers = #tpu.dot_dimension_numbers<[2], [1], [1], [2], [0, 0, 0, 1, 1, 2], [0], [0]>} : vector<1x32x16xf32>, vector<1x16x32xf32>, vector<1x32x32xf32> -> vector<1x32x32xf32>
    %12 = vector.shape_cast %9 : vector<32x1xf32> to vector<1x32x1xf32>
    %13 = vector.broadcast %12 : vector<1x32x1xf32> to vector<1x32x32xf32>
    %14 = arith.addf %11, %13 : vector<1x32x32xf32>
    %cst_11 = arith.constant 0.000000e+00 : f32
    %15 = vector.broadcast %cst_11 : f32 to vector<1x32x32xf32>
    %16 = arith.maximumf %14, %15 : vector<1x32x32xf32>
    %c0_12 = arith.constant 0 : index
    %c0_13 = arith.constant 0 : index
    %17 = vector.load %arg6[%c0_12, %c0_13] : memref<32x32xf32, #tpu.memory_space<vmem>>, vector<32x32xf32>
    %c0_14 = arith.constant 0 : index
    %c0_15 = arith.constant 0 : index
    %18 = vector.load %arg7[%c0_14, %c0_15] : memref<32x1xf32, #tpu.memory_space<vmem>>, vector<32x1xf32>
    %19 = vector.shape_cast %17 : vector<32x32xf32> to vector<1x32x32xf32>
    %cst_16 = arith.constant dense<0.000000e+00> : vector<1x32x32xf32>
    %20 = tpu.matmul %19, %16, %cst_16 {dimension_numbers = #tpu.dot_dimension_numbers<[2], [1], [1], [2], [0, 0, 0, 1, 1, 2], [0], [0]>} : vector<1x32x32xf32>, vector<1x32x32xf32>, vector<1x32x32xf32> -> vector<1x32x32xf32>
    %21 = vector.shape_cast %18 : vector<32x1xf32> to vector<1x32x1xf32>
    %22 = vector.broadcast %21 : vector<1x32x1xf32> to vector<1x32x32xf32>
    %23 = arith.addf %20, %22 : vector<1x32x32xf32>
    %cst_17 = arith.constant 0.000000e+00 : f32
    %24 = vector.broadcast %cst_17 : f32 to vector<1x32x32xf32>
    %25 = arith.maximumf %23, %24 : vector<1x32x32xf32>
    %c0_18 = arith.constant 0 : index
    %c0_19 = arith.constant 0 : index
    %26 = vector.load %arg8[%c0_18, %c0_19] : memref<8x32xf32, #tpu.memory_space<vmem>>, vector<8x32xf32>
    %c0_20 = arith.constant 0 : index
    %c0_21 = arith.constant 0 : index
    %27 = vector.load %arg9[%c0_20, %c0_21] : memref<8x1xf32, #tpu.memory_space<vmem>>, vector<8x1xf32>
    %28 = vector.shape_cast %26 : vector<8x32xf32> to vector<1x8x32xf32>
    %cst_22 = arith.constant dense<0.000000e+00> : vector<1x8x32xf32>
    %29 = tpu.matmul %28, %25, %cst_22 {dimension_numbers = #tpu.dot_dimension_numbers<[2], [1], [1], [2], [0, 0, 0, 1, 1, 2], [0], [0]>} : vector<1x8x32xf32>, vector<1x32x32xf32>, vector<1x8x32xf32> -> vector<1x8x32xf32>
    %30 = vector.shape_cast %27 : vector<8x1xf32> to vector<1x8x1xf32>
    %31 = vector.broadcast %30 : vector<1x8x1xf32> to vector<1x8x32xf32>
    %32 = arith.addf %29, %31 : vector<1x8x32xf32>
    %33 = vector.shape_cast %32 : vector<1x8x32xf32> to vector<8x32xf32>
    %c0_23 = arith.constant 0 : index
    %c0_24 = arith.constant 0 : index
    %34 = vector.load %arg10[%c0_23, %c0_24] : memref<32x4xf32, #tpu.memory_space<vmem>>, vector<32x4xf32>
    %cst_25 = arith.constant dense<0.000000e+00> : vector<8x4xf32>
    %35 = tpu.matmul %33, %34, %cst_25 {dimension_numbers = #tpu.dot_dimension_numbers<[1], [0], [0], [1], [0, 0, 1, 1], [], []>} : vector<8x32xf32>, vector<32x4xf32>, vector<8x4xf32> -> vector<8x4xf32>
    %c0_26 = arith.constant 0 : index
    %c0_27 = arith.constant 0 : index
    %36 = vector.load %arg11[%c0_26, %c0_27] : memref<1x4xf32, #tpu.memory_space<vmem>>, vector<1x4xf32>
    %37 = vector.broadcast %36 : vector<1x4xf32> to vector<8x4xf32>
    %38 = arith.addf %35, %37 : vector<8x4xf32>
    %39 = vector.shape_cast %38 : vector<8x4xf32> to vector<1x8x4xf32>
    %c0_28 = arith.constant 0 : index
    %c0_29 = arith.constant 0 : index
    %c0_30 = arith.constant 0 : index
    %40 = vector.load %arg12[%c0_28, %c0_29, %c0_30] : memref<1x8x4xf32, #tpu.memory_space<vmem>>, vector<1x8x4xf32>
    tpu.vector_store %arg12[%c0_28, %c0_29, %c0_30], %39 {strides = array<i32>} : memref<1x8x4xf32, #tpu.memory_space<vmem>>, vector<1x8x4xf32>,
    return
  }
  func.func @transform_0(%arg0: i32) -> (i32, i32, i32) {
    %c0_i32 = arith.constant 0 : i32
    %c0_i32_0 = arith.constant 0 : i32
    %c0_i32_1 = arith.constant 0 : i32
    return %arg0, %c0_i32, %c0_i32_0 : i32, i32, i32
  }
  func.func @transform_1(%arg0: i32) -> (i32, i32) {
    %c0_i32 = arith.constant 0 : i32
    %c0_i32_0 = arith.constant 0 : i32
    %c0_i32_1 = arith.constant 0 : i32
    return %c0_i32, %c0_i32_0 : i32, i32
  }
  func.func @transform_2(%arg0: i32) -> (i32, i32) {
    %c0_i32 = arith.constant 0 : i32
    %c0_i32_0 = arith.constant 0 : i32
    %c0_i32_1 = arith.constant 0 : i32
    return %c0_i32, %c0_i32_0 : i32, i32
  }
  func.func @transform_3(%arg0: i32) -> (i32, i32) {
    %c0_i32 = arith.constant 0 : i32
    %c0_i32_0 = arith.constant 0 : i32
    %c0_i32_1 = arith.constant 0 : i32
    return %c0_i32, %c0_i32_0 : i32, i32
  }
  func.func @transform_4(%arg0: i32) -> (i32, i32) {
    %c0_i32 = arith.constant 0 : i32
    %c0_i32_0 = arith.constant 0 : i32
    %c0_i32_1 = arith.constant 0 : i32
    return %c0_i32, %c0_i32_0 : i32, i32
  }
  func.func @transform_5(%arg0: i32) -> (i32, i32) {
    %c0_i32 = arith.constant 0 : i32
    %c0_i32_0 = arith.constant 0 : i32
    %c0_i32_1 = arith.constant 0 : i32
    return %c0_i32, %c0_i32_0 : i32, i32
  }
  func.func @transform_6(%arg0: i32) -> (i32, i32) {
    %c0_i32 = arith.constant 0 : i32
    %c0_i32_0 = arith.constant 0 : i32
    %c0_i32_1 = arith.constant 0 : i32
    return %c0_i32, %c0_i32_0 : i32, i32
  }
  func.func @transform_7(%arg0: i32) -> (i32, i32) {
    %c0_i32 = arith.constant 0 : i32
    %c0_i32_0 = arith.constant 0 : i32
    %c0_i32_1 = arith.constant 0 : i32
    return %c0_i32, %c0_i32_0 : i32, i32
  }
  func.func @transform_8(%arg0: i32) -> (i32, i32) {
    %c0_i32 = arith.constant 0 : i32
    %c0_i32_0 = arith.constant 0 : i32
    %c0_i32_1 = arith.constant 0 : i32
    return %c0_i32, %c0_i32_0 : i32, i32
  }
  func.func @transform_9(%arg0: i32) -> (i32, i32) {
    %c0_i32 = arith.constant 0 : i32
    %c0_i32_0 = arith.constant 0 : i32
    %c0_i32_1 = arith.constant 0 : i32
    return %c0_i32, %c0_i32_0 : i32, i32
  }
  func.func @transform_10(%arg0: i32) -> (i32, i32) {
    %c0_i32 = arith.constant 0 : i32
    %c0_i32_0 = arith.constant 0 : i32
    %c0_i32_1 = arith.constant 0 : i32
    return %c0_i32, %c0_i32_0 : i32, i32
  }
  func.func @transform_11(%arg0: i32) -> (i32, i32, i32) {
    %c0_i32 = arith.constant 0 : i32
    %c0_i32_0 = arith.constant 0 : i32
    %c0_i32_1 = arith.constant 0 : i32
    return %arg0, %c0_i32, %c0_i32_0 : i32, i32, i32
  }
}

</mosaic_0001>

<llo_original>
// kernel: mlp_forward.1
$region0: #{mlp_forward.1}
  #allocation0 [shape = 'u32[]', space=smem, size = 0x4, offset = 0x4, fixed_abs, tag = 'smem constant byte address 0x4 - core index']
  #allocation1 [shape = 'u32[72,128]{1,0:T(1,128)}', space=vmem, size = 0x9000, scoped, tag = 'internal scratch']
  %s0 = inlined_call_operand.vmem [shape: f32[2,16,16], index: 0, kind: input, shape index: {}]
  %s1 = inlined_call_operand.vmem [shape: f32[16,32], index: 1, kind: input, shape index: {}]
  %s2 = inlined_call_operand.vmem [shape: f32[16,32], index: 2, kind: input, shape index: {}]
  %s3 = inlined_call_operand.vmem [shape: f32[32,16], index: 3, kind: input, shape index: {}]
  %s4 = inlined_call_operand.vmem [shape: f32[32,1], index: 4, kind: input, shape index: {}]
  %s5 = inlined_call_operand.vmem [shape: f32[32,32], index: 5, kind: input, shape index: {}]
  %s6 = inlined_call_operand.vmem [shape: f32[32,1], index: 6, kind: input, shape index: {}]
  %s7 = inlined_call_operand.vmem [shape: f32[8,32], index: 7, kind: input, shape index: {}]
  %s8 = inlined_call_operand.vmem [shape: f32[8,1], index: 8, kind: input, shape index: {}]
  %s9 = inlined_call_operand.vmem [shape: f32[32,4], index: 9, kind: input, shape index: {}]
  %s10 = inlined_call_operand.vmem [shape: f32[1,4], index: 10, kind: input, shape index: {}]
  %s11 = inlined_call_operand.vmem [shape: f32[2,8,4], index: 11, kind: output, shape index: {}]
  %s12 = sld [smem:[#allocation0]]
  $region77: #{mlp_forward.1} parent=0
    _
  %s14 = ssub.s32 1, %s12
  %s15 = scalar_select 0, %s14, %s12
  loop: start=0, step=1, limit=4
  $region2: #{mlp_forward.1} parent=0 // loop_pre_header
    _
  $region3: #{mlp_forward.1} parent=0 // loop_header
    %s17 = sphi 0, %s21
    %p18 = scmp.ge.s32.totalorder %s17, 4
    %s27 = sphi 0, %s29
    %s30 = sphi 0, %s27
    %s31 = sphi 0, %s30
    %s47 = sphi 0, %s31
    %s51 = sphi 0, %s51
    %s53 = sphi 0, %s51
    %s54 = sphi 0, %s53
    %s68 = sphi 0, %s54
    %s72 = sphi 0, %s72
    %s74 = sphi 0, %s72
    %s75 = sphi 0, %s74
    %s89 = sphi 0, %s75
    %s93 = sphi 0, %s93
    %s95 = sphi 0, %s93
    %s96 = sphi 0, %s95
    %s110 = sphi 0, %s96
    %s114 = sphi 0, %s114
    %s116 = sphi 0, %s114
    %s117 = sphi 0, %s116
    %s131 = sphi 0, %s117
    %s135 = sphi 0, %s135
    %s137 = sphi 0, %s135
    %s138 = sphi 0, %s137
    %s152 = sphi 0, %s138
    %s156 = sphi 0, %s156
    %s158 = sphi 0, %s156
    %s159 = sphi 0, %s158
    %s173 = sphi 0, %s159
    %s177 = sphi 0, %s177
    %s179 = sphi 0, %s177
    %s180 = sphi 0, %s179
    %s194 = sphi 0, %s180
    %s198 = sphi 0, %s198
    %s200 = sphi 0, %s198
    %s201 = sphi 0, %s200
    %s215 = sphi 0, %s201
    %s219 = sphi 0, %s219
    %s221 = sphi 0, %s219
    %s222 = sphi 0, %s221
    %s236 = sphi 0, %s222
    %s240 = sphi 0, %s240
    %s242 = sphi 0, %s240
    %s243 = sphi 0, %s242
    %s257 = sphi 0, %s243
    %s263 = sphi 0, %s265
    %s266 = sphi 0, %s263
    %s267 = sphi 0, %s266
    %s283 = sphi 0, %s267
  $region4: #{mlp_forward.1} parent=0 // loop_header_branch
    %20 = sbr.rel (%p18) target = $region8
  $region5: #{mlp_forward.1} parent=0 // loop_body
    %s22 = ssub.s32 %s17, 1
    %s23 = ssub.s32 %s17, 2
    %s24 = sadd.s32 %s17, 1
    %s25 = ssub.s32 %s17, %s24
    %p26 = scmp.eq.s32.totalorder %s25, 0
    %s28 = sadd.s32 %s27, 1
    %s29 = scalar_select %p26, %s27, %s28
    %p32 = pneg %p26
    %p33 = scmp.eq.s32.totalorder %s17, 1
    %p34 = por %p32, %p33
    %p35 = scmp.ne.s32.totalorder %s27, %s30
    %p36 = scmp.eq.s32.totalorder %s17, 0
    %p37 = por %p35, %p36
    %p38 = scmp.ne.s32.totalorder %s27, %s30
    %p39 = scmp.eq.s32.totalorder %s22, 1
    %p40 = por %p38, %p39
    %p41 = scmp.ne.s32.totalorder %s30, %s31
    %p42 = scmp.eq.s32.totalorder %s22, 0
    %p43 = por %p41, %p42
    %p44 = scmp.ne.s32.totalorder %s30, %s31
    %p45 = scmp.eq.s32.totalorder %s23, 1
    %p46 = por %p44, %p45
    %p48 = scmp.ne.s32.totalorder %s31, %s47
    %p49 = scmp.eq.s32.totalorder %s23, 0
    %p50 = por %p48, %p49
    %s52 = sadd.s32 %s51, 1
    %p55 = scmp.eq.s32.totalorder %s17, 1
    %p56 = scmp.ne.s32.totalorder %s51, %s53
    %p57 = scmp.eq.s32.totalorder %s17, 0
    %p58 = por %p56, %p57
    %p59 = scmp.ne.s32.totalorder %s51, %s53
    %p60 = scmp.eq.s32.totalorder %s22, 1
    %p61 = por %p59, %p60
    %p62 = scmp.ne.s32.totalorder %s53, %s54
    %p63 = scmp.eq.s32.totalorder %s22, 0
    %p64 = por %p62, %p63
    %p65 = scmp.ne.s32.totalorder %s53, %s54
    %p66 = scmp.eq.s32.totalorder %s23, 1
    %p67 = por %p65, %p66
    %p69 = scmp.ne.s32.totalorder %s54, %s68
    %p70 = scmp.eq.s32.totalorder %s23, 0
    %p71 = por %p69, %p70
    %s73 = sadd.s32 %s72, 1
    %p76 = scmp.eq.s32.totalorder %s17, 1
    %p77 = scmp.ne.s32.totalorder %s72, %s74
    %p78 = scmp.eq.s32.totalorder %s17, 0
    %p79 = por %p77, %p78
    %p80 = scmp.ne.s32.totalorder %s72, %s74
    %p81 = scmp.eq.s32.totalorder %s22, 1
    %p82 = por %p80, %p81
    %p83 = scmp.ne.s32.totalorder %s74, %s75
    %p84 = scmp.eq.s32.totalorder %s22, 0
    %p85 = por %p83, %p84
    %p86 = scmp.ne.s32.totalorder %s74, %s75
    %p87 = scmp.eq.s32.totalorder %s23, 1
    %p88 = por %p86, %p87
    %p90 = scmp.ne.s32.totalorder %s75, %s89
    %p91 = scmp.eq.s32.totalorder %s23, 0
    %p92 = por %p90, %p91
    %s94 = sadd.s32 %s93, 1
    %p97 = scmp.eq.s32.totalorder %s17, 1
    %p98 = scmp.ne.s32.totalorder %s93, %s95
    %p99 = scmp.eq.s32.totalorder %s17, 0
    %p100 = por %p98, %p99
    %p101 = scmp.ne.s32.totalorder %s93, %s95
    %p102 = scmp.eq.s32.totalorder %s22, 1
    %p103 = por %p101, %p102
    %p104 = scmp.ne.s32.totalorder %s95, %s96
    %p105 = scmp.eq.s32.totalorder %s22, 0
    %p106 = por %p104, %p105
    %p107 = scmp.ne.s32.totalorder %s95, %s96
    %p108 = scmp.eq.s32.totalorder %s23, 1
    %p109 = por %p107, %p108
    %p111 = scmp.ne.s32.totalorder %s96, %s110
    %p112 = scmp.eq.s32.totalorder %s23, 0
    %p113 = por %p111, %p112
    %s115 = sadd.s32 %s114, 1
    %p118 = scmp.eq.s32.totalorder %s17, 1
    %p119 = scmp.ne.s32.totalorder %s114, %s116
    %p120 = scmp.eq.s32.totalorder %s17, 0
    %p121 = por %p119, %p120
    %p122 = scmp.ne.s32.totalorder %s114, %s116
    %p123 = scmp.eq.s32.totalorder %s22, 1
    %p124 = por %p122, %p123
    %p125 = scmp.ne.s32.totalorder %s116, %s117
    %p126 = scmp.eq.s32.totalorder %s22, 0
    %p127 = por %p125, %p126
    %p128 = scmp.ne.s32.totalorder %s116, %s117
    %p129 = scmp.eq.s32.totalorder %s23, 1
    %p130 = por %p128, %p129
    %p132 = scmp.ne.s32.totalorder %s117, %s131
    %p133 = scmp.eq.s32.totalorder %s23, 0
    %p134 = por %p132, %p133
    %s136 = sadd.s32 %s135, 1
    %p139 = scmp.eq.s32.totalorder %s17, 1
    %p140 = scmp.ne.s32.totalorder %s135, %s137
    %p141 = scmp.eq.s32.totalorder %s17, 0
    %p142 = por %p140, %p141
    %p143 = scmp.ne.s32.totalorder %s135, %s137
    %p144 = scmp.eq.s32.totalorder %s22, 1
    %p145 = por %p143, %p144
    %p146 = scmp.ne.s32.totalorder %s137, %s138
    %p147 = scmp.eq.s32.totalorder %s22, 0
    %p148 = por %p146, %p147
    %p149 = scmp.ne.s32.totalorder %s137, %s138
    %p150 = scmp.eq.s32.totalorder %s23, 1
    %p151 = por %p149, %p150
    %p153 = scmp.ne.s32.totalorder %s138, %s152
    %p154 = scmp.eq.s32.totalorder %s23, 0
    %p155 = por %p153, %p154
    %s157 = sadd.s32 %s156, 1
    %p160 = scmp.eq.s32.totalorder %s17, 1
    %p161 = scmp.ne.s32.totalorder %s156, %s158
    %p162 = scmp.eq.s32.totalorder %s17, 0
    %p163 = por %p161, %p162
    %p164 = scmp.ne.s32.totalorder %s156, %s158
    %p165 = scmp.eq.s32.totalorder %s22, 1
    %p166 = por %p164, %p165
    %p167 = scmp.ne.s32.totalorder %s158, %s159
    %p168 = scmp.eq.s32.totalorder %s22, 0
    %p169 = por %p167, %p168
    %p170 = scmp.ne.s32.totalorder %s158, %s159
    %p171 = scmp.eq.s32.totalorder %s23, 1
    %p172 = por %p170, %p171
    %p174 = scmp.ne.s32.totalorder %s159, %s173
    %p175 = scmp.eq.s32.totalorder %s23, 0
    %p176 = por %p174, %p175
    %s178 = sadd.s32 %s177, 1
    %p181 = scmp.eq.s32.totalorder %s17, 1
    %p182 = scmp.ne.s32.totalorder %s177, %s179
    %p183 = scmp.eq.s32.totalorder %s17, 0
    %p184 = por %p182, %p183
    %p185 = scmp.ne.s32.totalorder %s177, %s179
    %p186 = scmp.eq.s32.totalorder %s22, 1
    %p187 = por %p185, %p186
    %p188 = scmp.ne.s32.totalorder %s179, %s180
    %p189 = scmp.eq.s32.totalorder %s22, 0
    %p190 = por %p188, %p189
    %p191 = scmp.ne.s32.totalorder %s179, %s180
    %p192 = scmp.eq.s32.totalorder %s23, 1
    %p193 = por %p191, %p192
    %p195 = scmp.ne.s32.totalorder %s180, %s194
    %p196 = scmp.eq.s32.totalorder %s23, 0
    %p197 = por %p195, %p196
    %s199 = sadd.s32 %s198, 1
    %p202 = scmp.eq.s32.totalorder %s17, 1
    %p203 = scmp.ne.s32.totalorder %s198, %s200
    %p204 = scmp.eq.s32.totalorder %s17, 0
    %p205 = por %p203, %p204
    %p206 = scmp.ne.s32.totalorder %s198, %s200
    %p207 = scmp.eq.s32.totalorder %s22, 1
    %p208 = por %p206, %p207
    %p209 = scmp.ne.s32.totalorder %s200, %s201
    %p210 = scmp.eq.s32.totalorder %s22, 0
    %p211 = por %p209, %p210
    %p212 = scmp.ne.s32.totalorder %s200, %s201
    %p213 = scmp.eq.s32.totalorder %s23, 1
    %p214 = por %p212, %p213
    %p216 = scmp.ne.s32.totalorder %s201, %s215
    %p217 = scmp.eq.s32.totalorder %s23, 0
    %p218 = por %p216, %p217
    %s220 = sadd.s32 %s219, 1
    %p223 = scmp.eq.s32.totalorder %s17, 1
    %p224 = scmp.ne.s32.totalorder %s219, %s221
    %p225 = scmp.eq.s32.totalorder %s17, 0
    %p226 = por %p224, %p225
    %p227 = scmp.ne.s32.totalorder %s219, %s221
    %p228 = scmp.eq.s32.totalorder %s22, 1
    %p229 = por %p227, %p228
    %p230 = scmp.ne.s32.totalorder %s221, %s222
    %p231 = scmp.eq.s32.totalorder %s22, 0
    %p232 = por %p230, %p231
    %p233 = scmp.ne.s32.totalorder %s221, %s222
    %p234 = scmp.eq.s32.totalorder %s23, 1
    %p235 = por %p233, %p234
    %p237 = scmp.ne.s32.totalorder %s222, %s236
    %p238 = scmp.eq.s32.totalorder %s23, 0
    %p239 = por %p237, %p238
    %s241 = sadd.s32 %s240, 1
    %p244 = scmp.eq.s32.totalorder %s17, 1
    %p245 = scmp.ne.s32.totalorder %s240, %s242
    %p246 = scmp.eq.s32.totalorder %s17, 0
    %p247 = por %p245, %p246
    %p248 = scmp.ne.s32.totalorder %s240, %s242
    %p249 = scmp.eq.s32.totalorder %s22, 1
    %p250 = por %p248, %p249
    %p251 = scmp.ne.s32.totalorder %s242, %s243
    %p252 = scmp.eq.s32.totalorder %s22, 0
    %p253 = por %p251, %p252
    %p254 = scmp.ne.s32.totalorder %s242, %s243
    %p255 = scmp.eq.s32.totalorder %s23, 1
    %p256 = por %p254, %p255
    %p258 = scmp.ne.s32.totalorder %s243, %s257
    %p259 = scmp.eq.s32.totalorder %s23, 0
    %p260 = por %p258, %p259
    %s261 = ssub.s32 %s17, %s24
    %p262 = scmp.eq.s32.totalorder %s261, 0
    %s264 = sadd.s32 %s263, 1
    %s265 = scalar_select %p262, %s263, %s264
    %p268 = pneg %p262
    %p269 = scmp.eq.s32.totalorder %s17, 1
    %p270 = por %p268, %p269
    %p271 = scmp.ne.s32.totalorder %s263, %s266
    %p272 = scmp.eq.s32.totalorder %s17, 0
    %p273 = por %p271, %p272
    %p274 = scmp.ne.s32.totalorder %s263, %s266
    %p275 = scmp.eq.s32.totalorder %s22, 1
    %p276 = por %p274, %p275
    %p277 = scmp.ne.s32.totalorder %s266, %s267
    %p278 = scmp.eq.s32.totalorder %s22, 0
    %p279 = por %p277, %p278
    %p280 = scmp.ne.s32.totalorder %s266, %s267
    %p281 = scmp.eq.s32.totalorder %s23, 1
    %p282 = por %p280, %p281
    %p284 = scmp.ne.s32.totalorder %s267, %s283
    %p285 = scmp.eq.s32.totalorder %s23, 0
    %p286 = por %p284, %p285
    %p287 = scmp.le.s32.totalorder 1, %s17
    %p288 = scmp.lt.s32.totalorder %s17, 3
    %p289 = pnand %p287, %p288
    %p290 = pneg %p289
    // Predicated region
    $region9: #{mlp_forward.1} parent=5 // pred_check
      _
    $region10: #{mlp_forward.1} parent=5 // pred_check_branch
      %292 = sbr.rel (%p289) target = $region12
    $region11: #{mlp_forward.1} parent=5 // pred_region
      %s293 = ssub.s32 %s17, 1
      // Predicated region
      $region13: #{mlp_forward.1} parent=11 // pred_check
        %p294 = pneg %p64
      $region14: #{mlp_forward.1} parent=11 // pred_check_branch
        %296 = sbr.rel (%p294) target = $region16
      $region15: #{mlp_forward.1} parent=11 // pred_region
        _
      $region16: #{mlp_forward.1} parent=11 // pred_fallthru
        _
      // Predicated region
      $region17: #{mlp_forward.1} parent=11 // pred_check
        %p297 = pneg %p85
      $region18: #{mlp_forward.1} parent=11 // pred_check_branch
        %299 = sbr.rel (%p297) target = $region20
      $region19: #{mlp_forward.1} parent=11 // pred_region
        _
      $region20: #{mlp_forward.1} parent=11 // pred_fallthru
        _
      // Predicated region
      $region21: #{mlp_forward.1} parent=11 // pred_check
        %p300 = pneg %p106
      $region22: #{mlp_forward.1} parent=11 // pred_check_branch
        %302 = sbr.rel (%p300) target = $region24
      $region23: #{mlp_forward.1} parent=11 // pred_region
        _
      $region24: #{mlp_forward.1} parent=11 // pred_fallthru
        _
      // Predicated region
      $region25: #{mlp_forward.1} parent=11 // pred_check
        %p303 = pneg %p127
      $region26: #{mlp_forward.1} parent=11 // pred_check_branch
        %305 = sbr.rel (%p303) target = $region28
      $region27: #{mlp_forward.1} parent=11 // pred_region
        _
      $region28: #{mlp_forward.1} parent=11 // pred_fallthru
        _
      // Predicated region
      $region29: #{mlp_forward.1} parent=11 // pred_check
        %p306 = pneg %p148
      $region30: #{mlp_forward.1} parent=11 // pred_check_branch
        %308 = sbr.rel (%p306) target = $region32
      $region31: #{mlp_forward.1} parent=11 // pred_region
        _
      $region32: #{mlp_forward.1} parent=11 // pred_fallthru
        _
      // Predicated region
      $region33: #{mlp_forward.1} parent=11 // pred_check
        %p309 = pneg %p169
      $region34: #{mlp_forward.1} parent=11 // pred_check_branch
        %311 = sbr.rel (%p309) target = $region36
      $region35: #{mlp_forward.1} parent=11 // pred_region
        _
      $region36: #{mlp_forward.1} parent=11 // pred_fallthru
        _
      // Predicated region
      $region37: #{mlp_forward.1} parent=11 // pred_check
        %p312 = pneg %p190
      $region38: #{mlp_forward.1} parent=11 // pred_check_branch
        %314 = sbr.rel (%p312) target = $region40
      $region39: #{mlp_forward.1} parent=11 // pred_region
        _
      $region40: #{mlp_forward.1} parent=11 // pred_fallthru
        _
      // Predicated region
      $region41: #{mlp_forward.1} parent=11 // pred_check
        %p315 = pneg %p211
      $region42: #{mlp_forward.1} parent=11 // pred_check_branch
        %317 = sbr.rel (%p315) target = $region44
      $region43: #{mlp_forward.1} parent=11 // pred_region
        _
      $region44: #{mlp_forward.1} parent=11 // pred_fallthru
        _
      // Predicated region
      $region45: #{mlp_forward.1} parent=11 // pred_check
        %p318 = pneg %p232
      $region46: #{mlp_forward.1} parent=11 // pred_check_branch
        %320 = sbr.rel (%p318) target = $region48
      $region47: #{mlp_forward.1} parent=11 // pred_region
        _
      $region48: #{mlp_forward.1} parent=11 // pred_fallthru
        _
      // Predicated region
      $region49: #{mlp_forward.1} parent=11 // pred_check
        %p321 = pneg %p253
      $region50: #{mlp_forward.1} parent=11 // pred_check_branch
        %323 = sbr.rel (%p321) target = $region52
      $region51: #{mlp_forward.1} parent=11 // pred_region
        _
      $region52: #{mlp_forward.1} parent=11 // pred_fallthru
        _
    $region12: #{mlp_forward.1} parent=5 // pred_fallthru
      _
    %p324 = scmp.lt.s32.totalorder %s17, 2
    // Predicated region
    $region53: #{mlp_forward.1} parent=5 // pred_check
      %p325 = pneg %p324
    $region54: #{mlp_forward.1} parent=5 // pred_check_branch
      %327 = sbr.rel (%p325) target = $region56
    $region55: #{mlp_forward.1} parent=5 // pred_region
      // Predicated region
      $region57: #{mlp_forward.1} parent=55 // pred_check
        %p328 = pneg %p37
      $region58: #{mlp_forward.1} parent=55 // pred_check_branch
        %330 = sbr.rel (%p328) target = $region60
      $region59: #{mlp_forward.1} parent=55 // pred_region
        %p331 = scmp.lt.s32.totalorder %s17, 1
        %s332 = scalar_select %p331, %s17, 1
        %s333 = smul.addr %s332, 2
        %s334 = smul.addr %s333, 8
        %s335 = scalar_lea.vmem %s0, %s334
      $region60: #{mlp_forward.1} parent=55 // pred_fallthru
        _
    $region56: #{mlp_forward.1} parent=5 // pred_fallthru
      _
    %p336 = scmp.le.s32.totalorder 1, %s17
    %p337 = scmp.lt.s32.totalorder %s17, 3
    %p338 = pnand %p336, %p337
    %p339 = pneg %p338
    // Predicated region
    $region61: #{mlp_forward.1} parent=5 // pred_check
      _
    $region62: #{mlp_forward.1} parent=5 // pred_check_branch
      %341 = sbr.rel (%p338) target = $region64
    $region63: #{mlp_forward.1} parent=5 // pred_region
      %s342 = ssub.s32 %s17, 1
      %p343 = scmp.lt.s32.totalorder %s22, 1
      %s344 = scalar_select %p343, %s22, 1
      %s345 = smul.addr %s344, 2
      %s346 = smul.addr %s345, 8
      %s347 = scalar_lea.vmem %s0, %s346
      %p348 = pneg %p43
      %p349 = pneg %p40
      %p350 = pneg %p64
      %p351 = pneg %p61
      %p352 = pneg %p85
      %p353 = pneg %p82
      %p354 = pneg %p106
      %p355 = pneg %p103
      %p356 = pneg %p127
      %p357 = pneg %p124
      %p358 = pneg %p148
      %p359 = pneg %p145
      %p360 = pneg %p169
      %p361 = pneg %p166
      %p362 = pneg %p190
      %p363 = pneg %p187
      %p364 = pneg %p211
      %p365 = pneg %p208
      %p366 = pneg %p232
      %p367 = pneg %p229
      %p368 = pneg %p253
      %p369 = pneg %p250
      %p370 = pneg %p279
      %p371 = pneg %p276
      %p372 = scmp.lt.s32.totalorder %s22, 1
      %s373 = scalar_select %p372, %s22, 1
      %s374 = smul.addr %s373, 8
      %s375 = scalar_lea.vmem %s11, %s374
      %p376 = scmp.lt.s32.totalorder %s22, 1
      %s377 = scalar_select %p376, %s22, 1
      %s378 = smul.addr %s377, 2
      %s379 = smul.addr %s378, 8
      %s380 = scalar_lea.vmem %s0, %s379
      %p381 = scmp.lt.s32.totalorder %s22, 1
      %s382 = scalar_select %p381, %s22, 1
      %s383 = smul.addr %s382, 8
      %s384 = scalar_lea.vmem %s11, %s383
      %v385 = vld [vmem:[%s380] sm:$0xff]
      %v386 = vld [vmem:[%s380 + $0x8] sm:$0xff]
      %v387 = vld [vmem:[%s1] sm:$0xff]
      %v388 = vld [vmem:[%s1 + $0x8] sm:$0xff]
      %vm389 = vcmask 130048
      %v391 = vsel %vm389, %v385, 0
      %v394 = vsel %vm389, %v386, 0
      %396 = vmatpush.msra.mxu0 0.0
      %397 = vmatpush.msra.mxu0 0.0
      %398 = vmatpush.msra.mxu0 0.0
      %399 = vmatpush.msra.mxu0 0.0
      %400 = vmatpush.msra.mxu0 0.0
      %401 = vmatpush.msra.mxu0 0.0
      %402 = vmatpush.msra.mxu0 0.0
      %403 = vmatpush.msra.mxu0 0.0
      %404 = vmatpush.msra.mxu0 0.0
      %405 = vmatpush.msra.mxu0 0.0
      %406 = vmatpush.msra.mxu0 0.0
      %407 = vmatpush.msra.mxu0 0.0
      %408 = vmatpush.msra.mxu0 0.0
      %409 = vmatpush.msra.mxu0 0.0
      %410 = vmatpush.msra.mxu0 %v388
      %411 = vmatpush.msra.mxu0 %v387
      %412 = vmatmul.f32.gmra.mxu0 %v391
      %v413 = vpop.f32.mrf.mxu0
      %v414 = vadd.f32 0.0, %v413
      %415 = vmatmul.f32.gmra.mxu0 %v394
      %v416 = vpop.f32.mrf.mxu0
      %v417 = vadd.f32 0.0, %v416
      %418 = vdwg.mxu0
      %v419 = vld [vmem:[%s2] sm:$0xff]
      %v420 = vld [vmem:[%s2 + $0x8] sm:$0xff]
      %v421 = vadd.f32 %v414, %v419
      %v422 = vadd.f32 %v417, %v420
      %v423 = vld [vmem:[%s3] sm:$0xff]
      %v424 = vld [vmem:[%s3 + $0x8] sm:$0xff]
      %v425 = vld [vmem:[%s3 + $0x10] sm:$0xff]
      %v426 = vld [vmem:[%s3 + $0x18] sm:$0xff]
      %v427 = vld [vmem:[%s4] sm:$0xff]
      %v428 = vld [vmem:[%s4 + $0x8] sm:$0xff]
      %v429 = vld [vmem:[%s4 + $0x10] sm:$0xff]
      %v430 = vld [vmem:[%s4 + $0x18] sm:$0xff]
      %432 = vset.pattern.permute.xlu0 0
      %433 = vperm.xlu0 %432, %v427
      %v434 = vpop.permute.xlu0 %433
      %437 = vset.pattern.permute.xlu0 0
      %438 = vperm.xlu0 %437, %v428
      %v439 = vpop.permute.xlu0 %438
      %442 = vset.pattern.permute.xlu0 0
      %443 = vperm.xlu0 %442, %v429
      %v444 = vpop.permute.xlu0 %443
      %447 = vset.pattern.permute.xlu0 0
      %448 = vperm.xlu0 %447, %v430
      %v449 = vpop.permute.xlu0 %448
      %v452 = vsel %vm389, %v423, 0
      %v455 = vsel %vm389, %v424, 0
      %v458 = vsel %vm389, %v425, 0
      %v461 = vsel %vm389, %v426, 0
      %463 = vmatpush.msra.mxu0 0.0
      %464 = vmatpush.msra.mxu0 0.0
      %465 = vmatpush.msra.mxu0 0.0
      %466 = vmatpush.msra.mxu0 0.0
      %467 = vmatpush.msra.mxu0 0.0
      %468 = vmatpush.msra.mxu0 0.0
      %469 = vmatpush.msra.mxu0 0.0
      %470 = vmatpush.msra.mxu0 0.0
      %471 = vmatpush.msra.mxu0 0.0
      %472 = vmatpush.msra.mxu0 0.0
      %473 = vmatpush.msra.mxu0 0.0
      %474 = vmatpush.msra.mxu0 0.0
      %475 = vmatpush.msra.mxu0 0.0
      %476 = vmatpush.msra.mxu0 0.0
      %477 = vmatpush.msra.mxu0 %v422
      %478 = vmatpush.msra.mxu0 %v421
      %479 = vmatmul.f32.gmra.mxu0 %v452
      %v480 = vpop.f32.mrf.mxu0
      %v481 = vadd.f32 %v434, %v480
      %482 = vmatmul.f32.gmra.mxu0 %v455
      %v483 = vpop.f32.mrf.mxu0
      %v484 = vadd.f32 %v439, %v483
      %485 = vmatmul.f32.gmra.mxu0 %v458
      %v486 = vpop.f32.mrf.mxu0
      %v487 = vadd.f32 %v444, %v486
      %488 = vmatmul.f32.gmra.mxu0 %v461
      %v489 = vpop.f32.mrf.mxu0
      %v490 = vadd.f32 %v449, %v489
      %491 = vdwg.mxu0
      %v492 = vmax.f32 %v481, 0.0
      %v493 = vmax.f32 %v484, 0.0
      %v494 = vmax.f32 %v487, 0.0
      %v495 = vmax.f32 %v490, 0.0
      %v496 = vld [vmem:[%s5] sm:$0xff]
      %v497 = vld [vmem:[%s5 + $0x8] sm:$0xff]
      %v498 = vld [vmem:[%s5 + $0x10] sm:$0xff]
      %v499 = vld [vmem:[%s5 + $0x18] sm:$0xff]
      %v500 = vld [vmem:[%s6] sm:$0xff]
      %v501 = vld [vmem:[%s6 + $0x8] sm:$0xff]
      %v502 = vld [vmem:[%s6 + $0x10] sm:$0xff]
      %v503 = vld [vmem:[%s6 + $0x18] sm:$0xff]
      %505 = vset.pattern.permute.xlu0 0
      %506 = vperm.xlu0 %505, %v500
      %v507 = vpop.permute.xlu0 %506
      %510 = vset.pattern.permute.xlu0 0
      %511 = vperm.xlu0 %510, %v501
      %v512 = vpop.permute.xlu0 %511
      %515 = vset.pattern.permute.xlu0 0
      %516 = vperm.xlu0 %515, %v502
      %v517 = vpop.permute.xlu0 %516
      %520 = vset.pattern.permute.xlu0 0
      %521 = vperm.xlu0 %520, %v503
      %v522 = vpop.permute.xlu0 %521
      %vm524 = vcmask 261120
      %v526 = vsel %vm524, %v496, 0
      %v529 = vsel %vm524, %v497, 0
      %v532 = vsel %vm524, %v498, 0
      %v535 = vsel %vm524, %v499, 0
      %537 = vmatpush.msra.mxu0 0.0
      %538 = vmatpush.msra.mxu0 0.0
      %539 = vmatpush.msra.mxu0 0.0
      %540 = vmatpush.msra.mxu0 0.0
      %541 = vmatpush.msra.mxu0 0.0
      %542 = vmatpush.msra.mxu0 0.0
      %543 = vmatpush.msra.mxu0 0.0
      %544 = vmatpush.msra.mxu0 0.0
      %545 = vmatpush.msra.mxu0 0.0
      %546 = vmatpush.msra.mxu0 0.0
      %547 = vmatpush.msra.mxu0 0.0
      %548 = vmatpush.msra.mxu0 0.0
      %549 = vmatpush.msra.mxu0 %v495
      %550 = vmatpush.msra.mxu0 %v494
      %551 = vmatpush.msra.mxu0 %v493
      %552 = vmatpush.msra.mxu0 %v492
      %553 = vmatmul.f32.gmra.mxu0 %v526
      %v554 = vpop.f32.mrf.mxu0
      %v555 = vadd.f32 %v507, %v554
      %556 = vmatmul.f32.gmra.mxu0 %v529
      %v557 = vpop.f32.mrf.mxu0
      %v558 = vadd.f32 %v512, %v557
      %559 = vmatmul.f32.gmra.mxu0 %v532
      %v560 = vpop.f32.mrf.mxu0
      %v561 = vadd.f32 %v517, %v560
      %562 = vmatmul.f32.gmra.mxu0 %v535
      %v563 = vpop.f32.mrf.mxu0
      %v564 = vadd.f32 %v522, %v563
      %565 = vdwg.mxu0
      %v566 = vmax.f32 %v555, 0.0
      %v567 = vmax.f32 %v558, 0.0
      %v568 = vmax.f32 %v561, 0.0
      %v569 = vmax.f32 %v564, 0.0
      %v570 = vld [vmem:[%s7] sm:$0xff]
      %v571 = vld [vmem:[%s8] sm:$0xff]
      %573 = vset.pattern.permute.xlu0 0
      %574 = vperm.xlu0 %573, %v571
      %v575 = vpop.permute.xlu0 %574
      %v578 = vsel %vm524, %v570, 0
      %580 = vmatpush.msra.mxu0 0.0
      %581 = vmatpush.msra.mxu0 0.0
      %582 = vmatpush.msra.mxu0 0.0
      %583 = vmatpush.msra.mxu0 0.0
      %584 = vmatpush.msra.mxu0 0.0
      %585 = vmatpush.msra.mxu0 0.0
      %586 = vmatpush.msra.mxu0 0.0
      %587 = vmatpush.msra.mxu0 0.0
      %588 = vmatpush.msra.mxu0 0.0
      %589 = vmatpush.msra.mxu0 0.0
      %590 = vmatpush.msra.mxu0 0.0
      %591 = vmatpush.msra.mxu0 0.0
      %592 = vmatpush.msra.mxu0 %v569
      %593 = vmatpush.msra.mxu0 %v568
      %594 = vmatpush.msra.mxu0 %v567
      %595 = vmatpush.msra.mxu0 %v566
      %596 = vmatmul.f32.gmra.mxu0 %v578
      %v597 = vpop.f32.mrf.mxu0
      %v598 = vadd.f32 %v575, %v597
      %599 = vdwg.mxu0
      %v600 = vld [vmem:[%s9] sm:$0xff]
      %v601 = vld [vmem:[%s9 + $0x8] sm:$0xff]
      %v602 = vld [vmem:[%s9 + $0x10] sm:$0xff]
      %v603 = vld [vmem:[%s9 + $0x18] sm:$0xff]
      %v604 = vld [vmem:[%s10] sm:$0x1]
      %v606 = vperm.slane %v604, 0
      %v609 = vsel %vm524, %v598, 0
      %611 = vmatpush.msra.mxu0 0.0
      %612 = vmatpush.msra.mxu0 0.0
      %613 = vmatpush.msra.mxu0 0.0
      %614 = vmatpush.msra.mxu0 0.0
      %615 = vmatpush.msra.mxu0 0.0
      %616 = vmatpush.msra.mxu0 0.0
      %617 = vmatpush.msra.mxu0 0.0
      %618 = vmatpush.msra.mxu0 0.0
      %619 = vmatpush.msra.mxu0 0.0
      %620 = vmatpush.msra.mxu0 0.0
      %621 = vmatpush.msra.mxu0 0.0
      %622 = vmatpush.msra.mxu0 0.0
      %623 = vmatpush.msra.mxu0 %v603
      %624 = vmatpush.msra.mxu0 %v602
      %625 = vmatpush.msra.mxu0 %v601
      %626 = vmatpush.msra.mxu0 %v600
      %627 = vmatmul.f32.gmra.mxu0 %v609
      %v628 = vpop.f32.mrf.mxu0
      %v629 = vadd.f32 %v606, %v628
      %630 = vdwg.mxu0
      %vm631 = vcmask 31744
      %632 = vst.msk [vmem:[%s384] sm:$0xff] %vm631, %v629
      %p633 = scmp.lt.s32.totalorder %s22, 1
      %s634 = scalar_select %p633, %s22, 1
      %s635 = smul.addr %s634, 8
      %s636 = scalar_lea.vmem %s11, %s635
      // Predicated region
      $region65: #{mlp_forward.1} parent=63 // pred_check
        %p637 = pneg %p276
      $region66: #{mlp_forward.1} parent=63 // pred_check_branch
        %639 = sbr.rel (%p637) target = $region68
      $region67: #{mlp_forward.1} parent=63 // pred_region
        _
      $region68: #{mlp_forward.1} parent=63 // pred_fallthru
        _
    $region64: #{mlp_forward.1} parent=5 // pred_fallthru
      _
    %p640 = scmp.le.s32.totalorder 2, %s17
    // Predicated region
    $region69: #{mlp_forward.1} parent=5 // pred_check
      %p641 = pneg %p640
    $region70: #{mlp_forward.1} parent=5 // pred_check_branch
      %643 = sbr.rel (%p641) target = $region72
    $region71: #{mlp_forward.1} parent=5 // pred_region
      %s644 = ssub.s32 %s17, 2
      // Predicated region
      $region73: #{mlp_forward.1} parent=71 // pred_check
        %p645 = pneg %p282
      $region74: #{mlp_forward.1} parent=71 // pred_check_branch
        %647 = sbr.rel (%p645) target = $region76
      $region75: #{mlp_forward.1} parent=71 // pred_region
        %p648 = scmp.lt.s32.totalorder %s23, 1
        %s649 = scalar_select %p648, %s23, 1
        %s650 = smul.addr %s649, 8
        %s651 = scalar_lea.vmem %s11, %s650
      $region76: #{mlp_forward.1} parent=71 // pred_fallthru
        _
    $region72: #{mlp_forward.1} parent=5 // pred_fallthru
      _
  $region6: #{mlp_forward.1} parent=0 // loop_footer
    %s21 = sadd.s32 1, %s17
  $region7: #{mlp_forward.1} parent=0 // loop_footer_branch
    %16 = sbr.rel target = $region3
  $region8: #{mlp_forward.1} parent=0 // loop_exit
    _

</llo_original>
